<compile_context>
chip_gen: v6e
topology: v6e:2x2x1
jax: 0.10.0
libtpu: 0.0.40
codegen_flags: <defaults>
</compile_context>

<pallas_src>
import functools

import jax
import jax.numpy as jnp
from jax import lax
from jax.experimental import pallas as pl
from jax.experimental.pallas import tpu as pltpu


def _round_up(x, m):
    return ((x + m - 1) // m) * m


def _ce_kernel(x_ref, lab_ref, out_ref, *, scale, eps, num_classes, num_valid,
               tile, sub, masked):
    # x_ref:   [c, tile]  native-dtype logits slab block (classes x positions)
    # lab_ref: [1, tile]  int32 per-position labels
    # out_ref: [1, tile]  f32 per-position smoothed NLL
    j = pl.program_id(0)
    c = num_classes

    # Hoisted constants (JAX does not CSE broadcast/iota inside the unroll).
    # ones has 8 identical rows so every matmul dim is hardware-tile aligned;
    # only row 0 of the (8, sub) result is used.
    ones = jnp.ones((8, c), jnp.float32)
    cls = lax.broadcasted_iota(jnp.int32, (c, sub), 0)          # class index
    lane = lax.broadcasted_iota(jnp.int32, (1, sub), 1)         # lane index

    def class_sum(v):
        # Class-axis (sublane) reduction on the otherwise-idle MXU.  f32
        # matmul accuracy is validated against the pure-f32 reference below.
        return jnp.dot(ones, v, preferred_element_type=jnp.float32)[0:1, :]

    def process(off):  # off: static Python int, multiple of 128
        # Cast/scale fused with the VMEM read of this sub-chunk (the DMA block
        # is much larger than the in-flight f32 working set).
        x = x_ref[:, pl.ds(off, sub)].astype(jnp.float32) * scale      # [c,sub]
        lab = lab_ref[:, pl.ds(off, sub)]                              # [1,sub]

        # Numerically stable log-sum-exp over classes.
        m = jnp.max(x, axis=0, keepdims=True)                          # [1,sub]
        e = jnp.exp(x - m)                                             # EUP
        lse = m + jnp.log(class_sum(e))                                # [1,sub]

        # Label logit per position (labels vary per lane -> compare/select,
        # with the reduction pushed to the MXU).
        x_lab = class_sum(jnp.where(cls == lab, x, 0.0))               # [1,sub]

        per_pos = lse - (1.0 - eps) * x_lab
        if eps:  # statically skipped when label_smooth=False
            per_pos = per_pos - (eps / c) * class_sum(x)

        if masked:
            # Zero out lane-padded positions (select, not multiply-mask).
            col = j * tile + off + lane
            per_pos = jnp.where(col < num_valid, per_pos, 0.0)

        out_ref[:, pl.ds(off, sub)] = per_pos

    # Short static unroll (<= 8 chunks by construction): static slice offsets
    # are free and the LLO scheduler sees the whole block.
    for k in range(tile // sub):
        process(k * sub)


def _vmem_capacity_bytes():
    try:
        return int(pltpu.get_tpu_info().vmem_capacity_bytes)
    except Exception:  # unknown chip / interpret mode -> conservative (v7x)
        return 64 * 1024 * 1024


def _choose_tiles(L, c, itemsize, tile=None, sub=None):
    # Generation-aware scoped-VMEM limit: v7x (64 MiB) -> 32 MiB, v5e/v6e -> 64 MiB.
    vmem_limit = min(_vmem_capacity_bytes() // 2, 64 * 1024 * 1024)
    if sub is None:
        # Per-chunk f32 working set (cast + exp + one-hot select live at once)
        # bounded to roughly the 256 KiB vreg file.
        sub = ((256 * 1024) // max(1, c * 4)) // 128 * 128
    sub = max(128, sub)
    if tile is None:
        # ~1-2 MiB of input per pipelined DMA block amortizes the ~0.35 us
        # per-grid-step overhead; capped at 8 sub-chunks to keep the unroll short.
        per_buf = min(2 * 1024 * 1024, vmem_limit // 8)
        tile = (per_buf // max(1, c * itemsize)) // 128 * 128
        tile = min(tile, 8 * sub)
    tile = max(128, min(tile, _round_up(L, 128)))
    sub = min(sub, tile)
    tile = (tile // sub) * sub                 # tile is an exact multiple of sub
    assert tile % 128 == 0 and sub % 128 == 0
    return tile, sub, _round_up(L, tile), vmem_limit


def cross_entropy_loss(logits, labels, *, scale=2 ** 4, label_smooth=True, eps=0.1,
                       tile=None, sub=None):
    """logits: [n, c, p] (any float dtype); labels: [n] int. Returns scalar f32 loss."""
    n, c, p = logits.shape
    eff_eps = float(eps) if label_smooth else 0.0
    itemsize = jnp.dtype(logits.dtype).itemsize
    L = n * p
    tile, sub, L_pad, vmem_limit = _choose_tiles(L, c, itemsize, tile, sub)
    num_tiles = L_pad // tile

    # Lane-dense slab: classes on sublanes, all n*p positions on lanes, native
    # dtype (bf16 stays bf16 in HBM; the kernel upcasts per sub-chunk).
    slab = jnp.transpose(logits, (1, 0, 2)).reshape(c, L)
    lab_row = jnp.broadcast_to(labels.astype(jnp.int32)[:, None], (n, p)).reshape(1, L)
    if L_pad != L:
        slab = jnp.pad(slab, ((0, 0), (0, L_pad - L)))
        lab_row = jnp.pad(lab_row, ((0, 0), (0, L_pad - L)))

    kernel = functools.partial(
        _ce_kernel, scale=float(scale), eps=eff_eps, num_classes=int(c),
        num_valid=int(L), tile=int(tile), sub=int(sub), masked=(L_pad != L))

    per_pos = pl.pallas_call(
        kernel,
        out_shape=jax.ShapeDtypeStruct((1, L_pad), jnp.float32),
        grid=(num_tiles,),
        in_specs=[
            pl.BlockSpec((c, tile), lambda j: (0, j)),        # logits slab block
            pl.BlockSpec((1, tile), lambda j: (0, j)),        # per-position labels
        ],
        out_specs=pl.BlockSpec((1, tile), lambda j: (0, j)),  # lane-dense output
        compiler_params=pltpu.CompilerParams(
            dimension_semantics=("parallel",),
            vmem_limit_bytes=int(vmem_limit)),
    )(slab, lab_row)

    # Tiny follow-up reduction (L_pad f32 values); divide by the TRUE n*p.
    return jnp.sum(per_pos) / jnp.float32(n * p)


def _reference(logits, labels, *, scale=2 ** 4, eps=0.1):
    # Pure-JAX reference matching torch F.cross_entropy(label_smoothing=eps,
    # reduction='mean') over all n*p positions.
    n, c, p = logits.shape
    x = logits.astype(jnp.float32) * scale                      # [n, c, p]
    logp = jax.nn.log_softmax(x, axis=1)
    lab = jnp.broadcast_to(labels[:, None], (n, p))
    picked = jnp.take_along_axis(logp, lab[:, None, :], axis=1)[:, 0, :]
    sum_logp = jnp.sum(logp, axis=1)
    per_pos = -((1.0 - eps) * picked + (eps / c) * sum_logp)
    return jnp.mean(per_pos)


if __name__ == "__main__":
    key = jax.random.PRNGKey(0)
    k1, k2, k3, k4 = jax.random.split(key, 4)

    # Small shapes consistent with the module: n ids, c classes, p body parts.
    n, c, p = 2, 32, 8
    logits = jax.random.normal(k1, (n, c, p), dtype=jnp.float32)
    labels = jax.random.randint(k2, (n,), 0, c, dtype=jnp.int32)

    # Tolerances at 1e-3 to allow for the MXU-based class reductions
    # (multi-pass f32 matmul) vs. the purely VPU-summed reference.
    loss = cross_entropy_loss(logits, labels, scale=2 ** 4, label_smooth=True, eps=0.1)
    jax.block_until_ready(loss)
    ref = _reference(logits, labels, scale=2 ** 4, eps=0.1)
    assert jnp.allclose(loss, ref, rtol=1e-3, atol=1e-3), (loss, ref)

    # Native bf16 input (kernel upcasts in VMEM; halves HBM read traffic).
    logits_bf16 = logits.astype(jnp.bfloat16)
    loss_bf16 = cross_entropy_loss(logits_bf16, labels)
    jax.block_until_ready(loss_bf16)
    ref_bf16 = _reference(logits_bf16, labels)
    assert jnp.allclose(loss_bf16, ref_bf16, rtol=1e-3, atol=1e-3), (loss_bf16, ref_bf16)

    # Larger p: exercises lane padding / masking with default auto-tiling.
    n2, c2, p2 = 3, 40, 300
    logits2 = jax.random.normal(k3, (n2, c2, p2), dtype=jnp.float32)
    labels2 = jax.random.randint(k4, (n2,), 0, c2, dtype=jnp.int32)
    loss2 = cross_entropy_loss(logits2, labels2)
    jax.block_until_ready(loss2)
    ref2 = _reference(logits2, labels2)
    assert jnp.allclose(loss2, ref2, rtol=1e-3, atol=1e-3), (loss2, ref2)

    # Force a multi-tile grid + multi-sub-chunk unroll + the eps == 0 path.
    loss3 = cross_entropy_loss(logits2, labels2, label_smooth=False,
                               tile=512, sub=256)
    jax.block_until_ready(loss3)
    ref3 = _reference(logits2, labels2, eps=0.0)
    assert jnp.allclose(loss3, ref3, rtol=1e-3, atol=1e-3), (loss3, ref3)

    # TODO(synk): the Odict `info` bookkeeping / loss.detach().clone() and the
    # optional log_accuracy argmax logging are host-side bookkeeping with no
    # Pallas equivalent; only the loss value itself is computed here.
    print("KERNEL_OK")
</pallas_src>

<mosaic_0001>
module attributes {stable_mosaic.version = 11 : i64} {
  func.func @_ce_kernel(%arg0: i32, %arg1: memref<32x128xf32, #tpu.memory_space<vmem>>, %arg2: memref<1x128xi32, #tpu.memory_space<vmem>>, %arg3: memref<1x128xf32, #tpu.memory_space<vmem>>) attributes {dimension_semantics = [#tpu.dimension_semantics<parallel>], iteration_bounds = array<i64: 1>, scalar_prefetch = 0 : i64, scratch_operands = 0 : i64, tpu.core_type = #tpu.core_type<tc>, window_params = [{transform_indices = @transform_0, window_bounds = array<i64: 32, 128>}, {transform_indices = @transform_1, window_bounds = array<i64: 1, 128>}, {transform_indices = @transform_2, window_bounds = array<i64: 1, 128>}]} {
    %cst = arith.constant 1.000000e+00 : f32
    %0 = vector.broadcast %cst : f32 to vector<8x32xf32>
    %1 = tpu.iota {dimensions = array<i32: 0>} : vector<32x128xi32>
    %2 = tpu.iota {dimensions = array<i32: 1>} : vector<1x128xi32>
    %c0 = arith.constant 0 : index
    %c0_0 = arith.constant 0 : index
    %3 = vector.load %arg1[%c0, %c0_0] : memref<32x128xf32, #tpu.memory_space<vmem>>, vector<32x128xf32>
    %cst_1 = arith.constant 1.600000e+01 : f32
    %4 = vector.broadcast %cst_1 : f32 to vector<32x128xf32>
    %5 = arith.mulf %3, %4 : vector<32x128xf32>
    %c0_2 = arith.constant 0 : index
    %c0_3 = arith.constant 0 : index
    %6 = vector.load %arg2[%c0_2, %c0_3] : memref<1x128xi32, #tpu.memory_space<vmem>>, vector<1x128xi32>
    %cst_4 = arith.constant dense<0xFF800000> : vector<128xf32>
    %7 = vector.multi_reduction <maximumf>, %5, %cst_4 [0] : vector<32x128xf32> to vector<128xf32>
    %8 = vector.shape_cast %7 : vector<128xf32> to vector<1x128xf32>
    %9 = vector.broadcast %8 : vector<1x128xf32> to vector<32x128xf32>
    %10 = arith.subf %5, %9 : vector<32x128xf32>
    %11 = math.exp %10 : vector<32x128xf32>
    %cst_5 = arith.constant dense<0.000000e+00> : vector<8x128xf32>
    %12 = tpu.matmul %0, %11, %cst_5 {dimension_numbers = #tpu.dot_dimension_numbers<[1], [0], [0], [1], [0, 0, 1, 1], [], []>} : vector<8x32xf32>, vector<32x128xf32>, vector<8x128xf32> -> vector<8x128xf32>
    %13 = vector.extract_strided_slice %12 {offsets = [0, 0], sizes = [1, 128], strides = [1, 1]} : vector<8x128xf32> to vector<1x128xf32>
    %14 = math.log %13 : vector<1x128xf32>
    %15 = arith.addf %8, %14 : vector<1x128xf32>
    %16 = vector.broadcast %6 : vector<1x128xi32> to vector<32x128xi32>
    %17 = arith.cmpi eq, %1, %16 : vector<32x128xi32>
    %cst_6 = arith.constant 0.000000e+00 : f32
    %18 = vector.broadcast %cst_6 : f32 to vector<32x128xf32>
    %19 = arith.select %17, %5, %18 : vector<32x128xi1>, vector<32x128xf32>
    %cst_7 = arith.constant dense<0.000000e+00> : vector<8x128xf32>
    %20 = tpu.matmul %0, %19, %cst_7 {dimension_numbers = #tpu.dot_dimension_numbers<[1], [0], [0], [1], [0, 0, 1, 1], [], []>} : vector<8x32xf32>, vector<32x128xf32>, vector<8x128xf32> -> vector<8x128xf32>
    %21 = vector.extract_strided_slice %20 {offsets = [0, 0], sizes = [1, 128], strides = [1, 1]} : vector<8x128xf32> to vector<1x128xf32>
    %cst_8 = arith.constant 0.899999976 : f32
    %22 = vector.broadcast %cst_8 : f32 to vector<1x128xf32>
    %23 = arith.mulf %22, %21 : vector<1x128xf32>
    %24 = arith.subf %15, %23 : vector<1x128xf32>
    %cst_9 = arith.constant dense<0.000000e+00> : vector<8x128xf32>
    %25 = tpu.matmul %0, %5, %cst_9 {dimension_numbers = #tpu.dot_dimension_numbers<[1], [0], [0], [1], [0, 0, 1, 1], [], []>} : vector<8x32xf32>, vector<32x128xf32>, vector<8x128xf32> -> vector<8x128xf32>
    %26 = vector.extract_strided_slice %25 {offsets = [0, 0], sizes = [1, 128], strides = [1, 1]} : vector<8x128xf32> to vector<1x128xf32>
    %cst_10 = arith.constant 3.125000e-03 : f32
    %27 = vector.broadcast %cst_10 : f32 to vector<1x128xf32>
    %28 = arith.mulf %27, %26 : vector<1x128xf32>
    %29 = arith.subf %24, %28 : vector<1x128xf32>
    %c128_i32 = arith.constant 128 : i32
    %30 = arith.muli %arg0, %c128_i32 : i32
    %c0_i32 = arith.constant 0 : i32
    %31 = arith.addi %30, %c0_i32 : i32
    %32 = vector.broadcast %31 : i32 to vector<1x128xi32>
    %33 = arith.addi %32, %2 : vector<1x128xi32>
    %c16_i32 = arith.constant 16 : i32
    %34 = vector.broadcast %c16_i32 : i32 to vector<1x128xi32>
    %35 = arith.cmpi slt, %33, %34 : vector<1x128xi32>
    %cst_11 = arith.constant 0.000000e+00 : f32
    %36 = vector.broadcast %cst_11 : f32 to vector<1x128xf32>
    %37 = arith.select %35, %29, %36 : vector<1x128xi1>, vector<1x128xf32>
    %c0_12 = arith.constant 0 : index
    %c0_13 = arith.constant 0 : index
    %38 = vector.load %arg3[%c0_12, %c0_13] : memref<1x128xf32, #tpu.memory_space<vmem>>, vector<1x128xf32>
    tpu.vector_store %arg3[%c0_12, %c0_13], %37 {strides = array<i32>} : memref<1x128xf32, #tpu.memory_space<vmem>>, vector<1x128xf32>,
    return
  }
  func.func @transform_0(%arg0: i32) -> (i32, i32) {
    %c0_i32 = arith.constant 0 : i32
    %c0_i32_0 = arith.constant 0 : i32
    return %c0_i32, %arg0 : i32, i32
  }
  func.func @transform_1(%arg0: i32) -> (i32, i32) {
    %c0_i32 = arith.constant 0 : i32
    %c0_i32_0 = arith.constant 0 : i32
    return %c0_i32, %arg0 : i32, i32
  }
  func.func @transform_2(%arg0: i32) -> (i32, i32) {
    %c0_i32 = arith.constant 0 : i32
    %c0_i32_0 = arith.constant 0 : i32
    return %c0_i32, %arg0 : i32, i32
  }
}

</mosaic_0001>

<llo_original>
// kernel: tpu_custom_call.1
$region0: #{tpu_custom_call.1}
  #allocation0 [shape = 'u32[]', space=smem, size = 0x4, offset = 0x4, fixed_abs, tag = 'smem constant byte address 0x4 - core index']
  #allocation1 [shape = 'u32[144,128]{1,0:T(1,128)}', space=vmem, size = 0x12000, scoped, tag = 'internal scratch']
  %s0 = inlined_call_operand.hbm [shape: f32[32,128], index: 0, kind: input, shape index: {}]
  %s1 = inlined_call_operand.vmem [shape: s32[1,128], index: 1, kind: input, shape index: {}]
  %s2 = inlined_call_operand.hbm [shape: f32[1,128], index: 2, kind: output, shape index: {}]
  %s3 = sld [smem:[#allocation0]]
  $region22: #{tpu_custom_call.1} parent=0
    _
  %s5 = ssub.s32 1, %s3
  %s6 = scalar_select 0, %s5, %s3
  $region1: #{tpu_custom_call.1} parent=0
    #allocation2 [shape = 'u8[16384]{0}', space=vmem, size = 0x4000, scoped, tag = 'input window, operand 0, single buffered']
    #allocation3 [shape = 's32[1]{0}', space=sflag, size = 0x4, scoped, tag = 'scoped memory for tpu_custom_call.1']
    #allocation4 [shape = 's32[1]{0}', space=sflag, size = 0x4, scoped, tag = 'scoped memory for tpu_custom_call.1']
    #allocation5 [shape = 'u8[512]{0}', space=vmem, size = 0x400, scoped, tag = 'output window, operand 0, single buffered']
    %7 = vsyncpa [#allocation3], 0
    %8 = vsyncpa [#allocation4], 0
    // Predicated region
    $region2: #{tpu_custom_call.1} parent=1 // pred_check
      _
    $region3: #{tpu_custom_call.1} parent=1 // pred_check_branch
      %10 = sbr.rel (0) target = $region5
    $region4: #{tpu_custom_call.1} parent=1 // pred_region
      %s12 = ssub.s32 512, 512
      %13 = vsyncadd [#allocation3], %s12
      %s14 = sshll.u32 [#allocation2], 4
      %s15 = int_to_ptr.vmem [resolvable:$true] %s14
      %20 = dma.hbm_to_vmem [thread:$0]  %s0, 512, %s15, [#allocation3], 128, 128, 8
    $region5: #{tpu_custom_call.1} parent=1 // pred_fallthru
      _
    // Predicated region
    $region6: #{tpu_custom_call.1} parent=1 // pred_check
      _
    $region7: #{tpu_custom_call.1} parent=1 // pred_check_branch
      %22 = sbr.rel (0) target = $region9
    $region8: #{tpu_custom_call.1} parent=1 // pred_region
      _
    $region9: #{tpu_custom_call.1} parent=1 // pred_fallthru
      _
    // Predicated region
    $region10: #{tpu_custom_call.1} parent=1 // pred_check
      _
    $region11: #{tpu_custom_call.1} parent=1 // pred_check_branch
      %24 = sbr.rel (0) target = $region13
    $region12: #{tpu_custom_call.1} parent=1 // pred_region
      %25 = dma.done [#allocation3], 512
    $region13: #{tpu_custom_call.1} parent=1 // pred_fallthru
      _
    %v26 = vlaneseq
    %v27 = vshrl.u32 %v26, 7
    %v28 = vadd.s32 %v27, 8
    %v29 = vadd.s32 %v27, 16
    %v30 = vadd.s32 %v27, 24
    %v31 = vlaneseq
    %v32 = vand.u32 %v31, 127
    %v33 = vld [vmem:[#allocation2] sm:$0xff]
    %v34 = vld [vmem:[#allocation2 + $0x8] sm:$0xff]
    %v35 = vld [vmem:[#allocation2 + $0x10] sm:$0xff]
    %v36 = vld [vmem:[#allocation2 + $0x18] sm:$0xff]
    %v37 = vmul.f32 %v33, 16.0
    %v38 = vmul.f32 %v34, 16.0
    %v39 = vmul.f32 %v35, 16.0
    %v40 = vmul.f32 %v36, 16.0
    %v41 = vld [vmem:[%s1] sm:$0x1]
    %v42 = vmax.f32 %v37, %v38
    %v43 = vmax.f32 %v39, %v40
    %v44 = vmax.f32 %v42, %v43
    %v45 = vrot.slane %v44, 4
    %v46 = vmax.f32 %v44, %v45
    %v47 = vrot.slane %v46, 2
    %v48 = vmax.f32 %v46, %v47
    %v49 = vrot.slane %v48, 1
    %v50 = vmax.f32 %v48, %v49
    %v51 = vsub.f32 %v37, %v50
    %v52 = vsub.f32 %v38, %v50
    %v53 = vsub.f32 %v39, %v50
    %v54 = vsub.f32 %v40, %v50
    %v55 = vmul.f32 %v51, 1.442695
    %v56 = vpow.pop %v55
    %v57 = vmul.f32 %v52, 1.442695
    %v58 = vpow.pop %v57
    %v59 = vmul.f32 %v53, 1.442695
    %v60 = vpow.pop %v59
    %v61 = vmul.f32 %v54, 1.442695
    %v62 = vpow.pop %v61
    %vm63 = vcmask 261120
    %v65 = vsel %vm63, 1.0, 0
    %67 = vmatprep.subr.mxu0 0.0
    %68 = vmatpush1.msra.mxu0 0.0
    %69 = vmatprep.subr.mxu0 0.0
    %70 = vmatpush1.msra.mxu0 0.0
    %71 = vmatprep.subr.mxu0 0.0
    %72 = vmatpush1.msra.mxu0 0.0
    %73 = vmatprep.subr.mxu0 0.0
    %74 = vmatpush1.msra.mxu0 0.0
    %75 = vmatprep.subr.mxu0 0.0
    %76 = vmatpush1.msra.mxu0 0.0
    %77 = vmatprep.subr.mxu0 0.0
    %78 = vmatpush1.msra.mxu0 0.0
    %79 = vmatprep.subr.mxu0 0.0
    %80 = vmatpush1.msra.mxu0 0.0
    %81 = vmatprep.subr.mxu0 0.0
    %82 = vmatpush1.msra.mxu0 0.0
    %83 = vmatprep.subr.mxu0 0.0
    %84 = vmatpush1.msra.mxu0 0.0
    %85 = vmatprep.subr.mxu0 0.0
    %86 = vmatpush1.msra.mxu0 0.0
    %87 = vmatprep.subr.mxu0 0.0
    %88 = vmatpush1.msra.mxu0 0.0
    %89 = vmatprep.subr.mxu0 0.0
    %90 = vmatpush1.msra.mxu0 0.0
    %91 = vmatprep.subr.mxu0 0.0
    %92 = vmatpush1.msra.mxu0 %v62
    %93 = vmatprep.subr.mxu0 0.0
    %94 = vmatpush1.msra.mxu0 %v60
    %95 = vmatprep.subr.mxu0 0.0
    %96 = vmatpush1.msra.mxu0 %v58
    %97 = vmatprep.subr.mxu0 0.0
    %98 = vmatpush1.msra.mxu0 %v56
    %99 = vmatprep.subr.mxu0 0.0
    %100 = vmatpush2.msra.mxu0 0.0
    %101 = vmatprep.subr.mxu0 0.0
    %102 = vmatpush2.msra.mxu0 0.0
    %103 = vmatprep.subr.mxu0 0.0
    %104 = vmatpush2.msra.mxu0 0.0
    %105 = vmatprep.subr.mxu0 0.0
    %106 = vmatpush2.msra.mxu0 0.0
    %107 = vmatprep.subr.mxu0 0.0
    %108 = vmatpush2.msra.mxu0 0.0
    %109 = vmatprep.subr.mxu0 0.0
    %110 = vmatpush2.msra.mxu0 0.0
    %111 = vmatprep.subr.mxu0 0.0
    %112 = vmatpush2.msra.mxu0 0.0
    %113 = vmatprep.subr.mxu0 0.0
    %114 = vmatpush2.msra.mxu0 0.0
    %115 = vmatprep.subr.mxu0 0.0
    %116 = vmatpush2.msra.mxu0 0.0
    %117 = vmatprep.subr.mxu0 0.0
    %118 = vmatpush2.msra.mxu0 0.0
    %119 = vmatprep.subr.mxu0 0.0
    %120 = vmatpush2.msra.mxu0 0.0
    %121 = vmatprep.subr.mxu0 0.0
    %122 = vmatpush2.msra.mxu0 0.0
    %123 = vmatprep.subr.mxu0 0.0
    %124 = vmatpush2.msra.mxu0 0.0
    %125 = vmatprep.subr.mxu0 0.0
    %126 = vmatpush2.msra.mxu0 0.0
    %127 = vmatprep.subr.mxu0 0.0
    %128 = vmatpush2.msra.mxu0 0.0
    %129 = vmatprep.subr.mxu0 0.0
    %130 = vmatpush2.msra.mxu0 0.0
    %131 = vmatprep.mubr.f32.mxu0 0.0
    %132 = vmatmul.mubr.f32.gmra.mxu0 %v65
    %v133 = vpop.f32.mrf.mxu0
    %v134 = vadd.f32 0.0, %v133
    %v135 = vpop.f32.mrf.mxu0
    %136 = vdwg.mxu0
    %v137 = vlog2.pop %v134
    %v138 = vmul.f32 %v137, 0.6931472
    %v139 = vadd.f32 %v50, %v138
    %v140 = vlaneseq
    %v141 = vshrl.u32 %v140, 7
    %v142 = vsub.s32 0, %v141
    %v143 = vrot.slane %v41, %v142
    %vm144 = vcmp.eq.s32.totalorder %v27, %v143
    %vm145 = vcmp.eq.s32.totalorder %v28, %v143
    %vm146 = vcmp.eq.s32.totalorder %v29, %v143
    %vm147 = vcmp.eq.s32.totalorder %v30, %v143
    %v148 = vsel %vm144, %v37, 0.0
    %v149 = vsel %vm145, %v38, 0.0
    %v150 = vsel %vm146, %v39, 0.0
    %v151 = vsel %vm147, %v40, 0.0
    %152 = vmatprep.subr.mxu0 0.0
    %153 = vmatpush1.msra.mxu0 0.0
    %154 = vmatprep.subr.mxu0 0.0
    %155 = vmatpush1.msra.mxu0 0.0
    %156 = vmatprep.subr.mxu0 0.0
    %157 = vmatpush1.msra.mxu0 0.0
    %158 = vmatprep.subr.mxu0 0.0
    %159 = vmatpush1.msra.mxu0 0.0
    %160 = vmatprep.subr.mxu0 0.0
    %161 = vmatpush1.msra.mxu0 0.0
    %162 = vmatprep.subr.mxu0 0.0
    %163 = vmatpush1.msra.mxu0 0.0
    %164 = vmatprep.subr.mxu0 0.0
    %165 = vmatpush1.msra.mxu0 0.0
    %166 = vmatprep.subr.mxu0 0.0
    %167 = vmatpush1.msra.mxu0 0.0
    %168 = vmatprep.subr.mxu0 0.0
    %169 = vmatpush1.msra.mxu0 0.0
    %170 = vmatprep.subr.mxu0 0.0
    %171 = vmatpush1.msra.mxu0 0.0
    %172 = vmatprep.subr.mxu0 0.0
    %173 = vmatpush1.msra.mxu0 0.0
    %174 = vmatprep.subr.mxu0 0.0
    %175 = vmatpush1.msra.mxu0 0.0
    %176 = vmatprep.subr.mxu0 0.0
    %177 = vmatpush1.msra.mxu0 %v151
    %178 = vmatprep.subr.mxu0 0.0
    %179 = vmatpush1.msra.mxu0 %v150
    %180 = vmatprep.subr.mxu0 0.0
    %181 = vmatpush1.msra.mxu0 %v149
    %182 = vmatprep.subr.mxu0 0.0
    %183 = vmatpush1.msra.mxu0 %v148
    %184 = vmatprep.subr.mxu0 0.0
    %185 = vmatpush2.msra.mxu0 0.0
    %186 = vmatprep.subr.mxu0 0.0
    %187 = vmatpush2.msra.mxu0 0.0
    %188 = vmatprep.subr.mxu0 0.0
    %189 = vmatpush2.msra.mxu0 0.0
    %190 = vmatprep.subr.mxu0 0.0
    %191 = vmatpush2.msra.mxu0 0.0
    %192 = vmatprep.subr.mxu0 0.0
    %193 = vmatpush2.msra.mxu0 0.0
    %194 = vmatprep.subr.mxu0 0.0
    %195 = vmatpush2.msra.mxu0 0.0
    %196 = vmatprep.subr.mxu0 0.0
    %197 = vmatpush2.msra.mxu0 0.0
    %198 = vmatprep.subr.mxu0 0.0
    %199 = vmatpush2.msra.mxu0 0.0
    %200 = vmatprep.subr.mxu0 0.0
    %201 = vmatpush2.msra.mxu0 0.0
    %202 = vmatprep.subr.mxu0 0.0
    %203 = vmatpush2.msra.mxu0 0.0
    %204 = vmatprep.subr.mxu0 0.0
    %205 = vmatpush2.msra.mxu0 0.0
    %206 = vmatprep.subr.mxu0 0.0
    %207 = vmatpush2.msra.mxu0 0.0
    %208 = vmatprep.subr.mxu0 0.0
    %209 = vmatpush2.msra.mxu0 0.0
    %210 = vmatprep.subr.mxu0 0.0
    %211 = vmatpush2.msra.mxu0 0.0
    %212 = vmatprep.subr.mxu0 0.0
    %213 = vmatpush2.msra.mxu0 0.0
    %214 = vmatprep.subr.mxu0 0.0
    %215 = vmatpush2.msra.mxu0 0.0
    %216 = vmatprep.mubr.f32.mxu0 0.0
    %217 = vmatmul.mubr.f32.gmra.mxu0 %v65
    %v218 = vpop.f32.mrf.mxu0
    %v219 = vadd.f32 0.0, %v218
    %v220 = vpop.f32.mrf.mxu0
    %221 = vdwg.mxu0
    %v222 = vmul.f32 %v219, 0.9
    %v223 = vsub.f32 %v139, %v222
    %224 = vmatprep.subr.mxu0 0.0
    %225 = vmatpush1.msra.mxu0 0.0
    %226 = vmatprep.subr.mxu0 0.0
    %227 = vmatpush1.msra.mxu0 0.0
    %228 = vmatprep.subr.mxu0 0.0
    %229 = vmatpush1.msra.mxu0 0.0
    %230 = vmatprep.subr.mxu0 0.0
    %231 = vmatpush1.msra.mxu0 0.0
    %232 = vmatprep.subr.mxu0 0.0
    %233 = vmatpush1.msra.mxu0 0.0
    %234 = vmatprep.subr.mxu0 0.0
    %235 = vmatpush1.msra.mxu0 0.0
    %236 = vmatprep.subr.mxu0 0.0
    %237 = vmatpush1.msra.mxu0 0.0
    %238 = vmatprep.subr.mxu0 0.0
    %239 = vmatpush1.msra.mxu0 0.0
    %240 = vmatprep.subr.mxu0 0.0
    %241 = vmatpush1.msra.mxu0 0.0
    %242 = vmatprep.subr.mxu0 0.0
    %243 = vmatpush1.msra.mxu0 0.0
    %244 = vmatprep.subr.mxu0 0.0
    %245 = vmatpush1.msra.mxu0 0.0
    %246 = vmatprep.subr.mxu0 0.0
    %247 = vmatpush1.msra.mxu0 0.0
    %248 = vmatprep.subr.mxu0 0.0
    %249 = vmatpush1.msra.mxu0 %v40
    %250 = vmatprep.subr.mxu0 0.0
    %251 = vmatpush1.msra.mxu0 %v39
    %252 = vmatprep.subr.mxu0 0.0
    %253 = vmatpush1.msra.mxu0 %v38
    %254 = vmatprep.subr.mxu0 0.0
    %255 = vmatpush1.msra.mxu0 %v37
    %256 = vmatprep.subr.mxu0 0.0
    %257 = vmatpush2.msra.mxu0 0.0
    %258 = vmatprep.subr.mxu0 0.0
    %259 = vmatpush2.msra.mxu0 0.0
    %260 = vmatprep.subr.mxu0 0.0
    %261 = vmatpush2.msra.mxu0 0.0
    %262 = vmatprep.subr.mxu0 0.0
    %263 = vmatpush2.msra.mxu0 0.0
    %264 = vmatprep.subr.mxu0 0.0
    %265 = vmatpush2.msra.mxu0 0.0
    %266 = vmatprep.subr.mxu0 0.0
    %267 = vmatpush2.msra.mxu0 0.0
    %268 = vmatprep.subr.mxu0 0.0
    %269 = vmatpush2.msra.mxu0 0.0
    %270 = vmatprep.subr.mxu0 0.0
    %271 = vmatpush2.msra.mxu0 0.0
    %272 = vmatprep.subr.mxu0 0.0
    %273 = vmatpush2.msra.mxu0 0.0
    %274 = vmatprep.subr.mxu0 0.0
    %275 = vmatpush2.msra.mxu0 0.0
    %276 = vmatprep.subr.mxu0 0.0
    %277 = vmatpush2.msra.mxu0 0.0
    %278 = vmatprep.subr.mxu0 0.0
    %279 = vmatpush2.msra.mxu0 0.0
    %280 = vmatprep.subr.mxu0 0.0
    %281 = vmatpush2.msra.mxu0 0.0
    %282 = vmatprep.subr.mxu0 0.0
    %283 = vmatpush2.msra.mxu0 0.0
    %284 = vmatprep.subr.mxu0 0.0
    %285 = vmatpush2.msra.mxu0 0.0
    %286 = vmatprep.subr.mxu0 0.0
    %287 = vmatpush2.msra.mxu0 0.0
    %288 = vmatprep.mubr.f32.mxu0 0.0
    %289 = vmatmul.mubr.f32.gmra.mxu0 %v65
    %v290 = vpop.f32.mrf.mxu0
    %v291 = vadd.f32 0.0, %v290
    %v292 = vpop.f32.mrf.mxu0
    %293 = vdwg.mxu0
    %v294 = vmul.f32 %v291, 0.003125
    %v295 = vsub.f32 %v223, %v294
    %s296 = smul.u32 0, 128
    %v297 = vstv %s296
    %v298 = vadd.s32 %v297, %v32
    %vm299 = vcmp.lt.s32.totalorder %v298, 16
    %v300 = vsel %vm299, %v295, 0.0
    %301 = vst [vmem:[#allocation5] sm:$0x1] %v300
    // Predicated region
    $region14: #{tpu_custom_call.1} parent=1 // pred_check
      _
    $region15: #{tpu_custom_call.1} parent=1 // pred_check_branch
      %303 = sbr.rel (0) target = $region17
    $region16: #{tpu_custom_call.1} parent=1 // pred_region
      %s305 = ssub.s32 16, 16
      %306 = vsyncadd [#allocation4], %s305
      %s308 = sshll.u32 [#allocation5], 4
      %s309 = int_to_ptr.vmem [resolvable:$true] %s308
      %311 = dma.vmem_to_hbm [thread:$0]  %s309, 16, %s2, [#allocation4]
    $region17: #{tpu_custom_call.1} parent=1 // pred_fallthru
      _
    // Predicated region
    $region18: #{tpu_custom_call.1} parent=1 // pred_check
      _
    $region19: #{tpu_custom_call.1} parent=1 // pred_check_branch
      %313 = sbr.rel (0) target = $region21
    $region20: #{tpu_custom_call.1} parent=1 // pred_region
      %314 = dma.done [#allocation4], 16
    $region21: #{tpu_custom_call.1} parent=1 // pred_fallthru
      _
    %315 = vsyncpa [#allocation3], 1
    %316 = vsyncpa [#allocation4], 1

</llo_original>
